<compile_context>
chip_gen: v5e
topology: v5e:2x2
jax: 0.10.0
libtpu: 0.0.40
codegen_flags: <defaults>
</compile_context>

<pallas_src>
import functools

import jax
import jax.numpy as jnp
import numpy as np
from jax.experimental import pallas as pl
from jax.experimental.pallas import tpu as pltpu


def _grouped_ffn_kernel(tile_e_ref, tile_ne_ref, x_ref, gw_ref,
                        w1_ref, b1_ref, w2_ref, b2_ref, y_ref, acc_ref,
                        *, approx_gelu):
    """One token tile of one expert, one H-chunk of its FFN.

    tile_e_ref  : (n_tiles,) scalar-prefetch expert id per tile (used only by index_maps)
    tile_ne_ref : (n_tiles,) scalar-prefetch non-empty flag per tile
    x_ref       : (tm, D)   gathered token rows (compute dtype)
    gw_ref      : (tm, 1)   per-row gate weight, fp32 (0 for padding rows)
    w1_ref      : (D, th)   chunk of this expert's first linear (transposed for x @ W)
    b1_ref      : (1, th)   fp32
    w2_ref      : (th, D)   chunk of this expert's second linear
    b2_ref      : (1, D)    fp32
    y_ref       : (tm, D)   output block (compute dtype), written only at the last H-chunk
    acc_ref     : (tm, D)   fp32 VMEM scratch accumulator across the H-chunk axis
    """
    i = pl.program_id(0)
    hk = pl.program_id(1)
    last = pl.num_programs(1) - 1
    nonempty = tile_ne_ref[i] > 0

    @pl.when(nonempty)
    def _compute():
        h = jnp.dot(x_ref[...], w1_ref[...], preferred_element_type=jnp.float32)
        h = h + b1_ref[...]
        if approx_gelu:
            # tanh-approx GELU -> EUP (frees VPU slots); tiny deviation from erf reference
            c = 0.7978845608028654  # sqrt(2/pi)
            h = 0.5 * h * (1.0 + jnp.tanh(c * (h + 0.044715 * h * h * h)))
        else:
            # exact (erf) GELU, matches the PyTorch reference bit-for-bit semantics
            h = 0.5 * h * (1.0 + jax.lax.erf(h * 0.7071067811865476))
        part = jnp.dot(h.astype(w2_ref.dtype), w2_ref[...],
                       preferred_element_type=jnp.float32)

        @pl.when(hk == 0)
        def _():
            acc_ref[...] = part

        @pl.when(hk > 0)
        def _():
            acc_ref[...] = acc_ref[...] + part

        @pl.when(hk == last)
        def _():
            y_ref[...] = ((acc_ref[...] + b2_ref[...]) * gw_ref[...]).astype(y_ref.dtype)

    @pl.when(jnp.logical_not(nonempty))
    def _skip():
        # fully-padded tile: skip both matmuls, emit exact zeros
        @pl.when(hk == last)
        def _():
            y_ref[...] = jnp.zeros_like(y_ref)


def moe_block_forward(x, wg, w1, b1, w2, b2, *, top_k, tm=None, th=None,
                      compute_dtype=jnp.bfloat16, approx_gelu=False):
    """x: (B,S,D); wg: (E,D); w1: (E+1,D,H); b1: (E+1,H); w2: (E+1,H,D); b2: (E+1,D).

    Expert index E (last) is the shared expert.  `tm` = token-tile rows (multiple of 8),
    `th` = hidden chunk (multiple of 128 or == H).  `compute_dtype` (default bf16) applies
    to activations/weights and the kernel output; accumulation stays fp32.
    """
    B, S, D = x.shape
    T = B * S
    E = wg.shape[0]
    Ep1, _, H = w1.shape
    assert Ep1 == E + 1

    cdt = jnp.dtype(compute_dtype)
    odt = cdt                      # kernel output dtype (bf16 halves writeback + scatter read)
    isz = cdt.itemsize
    osz = jnp.dtype(odt).itemsize

    # ---- chip-aware tile sizing / VMEM budget --------------------------------------
    try:
        vmem_cap = int(pltpu.get_tpu_info().vmem_capacity_bytes)
    except Exception:
        vmem_cap = 64 << 20        # conservative: v7x per-TensorCore VMEM
    vmem_cap_lim = int(vmem_cap * 0.80)   # leave ~20% headroom for the compiler

    if tm is None:
        tm = 512                   # raises weight-reuse AI toward v6e/v7x roofline
    if th is None:
        th = 1024

    th = min(th, H)
    if H % th != 0 or (th != H and th % 128 != 0):
        th = H                     # fall back to un-chunked hidden dim
    tm = max(8, (tm // 8) * 8)

    def _vmem_est(tm_, th_):
        return (2 * (tm_ * D * isz + tm_ * 4            # xs, gate-weight blocks (dbl-buf)
                     + 2 * D * th_ * isz                 # w1/w2 chunks (dbl-buf)
                     + th_ * 4 + D * 4                   # b1/b2 chunks (dbl-buf)
                     + tm_ * D * osz)                    # output block (dbl-buf)
                + tm_ * D * 4)                           # fp32 accumulator scratch

    # shrink th, then tm, until the working set fits the chip budget
    while _vmem_est(tm, th) + (4 << 20) > vmem_cap_lim and th % 256 == 0 and th > 128:
        th //= 2
    while _vmem_est(tm, th) + (4 << 20) > vmem_cap_lim and tm % 16 == 0 and tm > 64:
        tm //= 2

    # (8,128) rule: last dims of every block are either full-extent (D, 1) or satisfy these
    assert tm % 8 == 0, "token tile must be a multiple of 8"
    assert H % th == 0 and (th == H or th % 128 == 0), "th must divide H and be 128-aligned"
    n_hchunks = H // th

    # ---- gating (MoEGate eval path: softmax + unnormalized top-k) in plain JAX ----
    x2 = x.reshape(T, D)
    logits = jnp.dot(x2.astype(jnp.float32), wg.astype(jnp.float32).T)
    scores = jax.nn.softmax(logits, axis=-1)
    topv, topi = jax.lax.top_k(scores, top_k)            # norm_topk_prob=False

    # ---- sort (token, expert) assignments by expert; pad groups to tile multiples ----
    k = top_k
    flat_e = topi.reshape(-1).astype(jnp.int32)           # (T*k,)
    flat_w = topv.reshape(-1).astype(jnp.float32)
    flat_t = jnp.arange(T * k, dtype=jnp.int32) // k      # token id of each assignment

    order = jnp.argsort(flat_e)
    se, st, sw = flat_e[order], flat_t[order], flat_w[order]

    counts = jnp.bincount(flat_e, length=E)                        # tokens per expert
    compact_start = jnp.cumsum(counts) - counts
    padded_counts = ((counts + tm - 1) // tm) * tm                 # tile-aligned groups
    pcum = jnp.cumsum(padded_counts)
    padded_start = pcum - padded_counts

    n_routed_tiles = pl.cdiv(T * k, tm) + E                        # static upper bound
    n_shared_tiles = pl.cdiv(T, tm)
    P_routed = n_routed_tiles * tm
    P = P_routed + n_shared_tiles * tm
    n_tiles = n_routed_tiles + n_shared_tiles

    ar = jnp.arange(T * k, dtype=jnp.int32)
    dest = padded_start[se] + (ar - compact_start[se])             # row in padded slab

    gather_tok = jnp.zeros((P,), jnp.int32).at[dest].set(st)
    row_w = jnp.zeros((P,), jnp.float32).at[dest].set(sw)
    # shared-expert section: every token once, gate weight 1
    shared_rows = P_routed + jnp.arange(T, dtype=jnp.int32)
    gather_tok = gather_tok.at[shared_rows].set(jnp.arange(T, dtype=jnp.int32))
    row_w = row_w.at[shared_rows].set(1.0)

    # per-tile expert id (scalar-prefetched; drives the weight index_maps).  Tiles past
    # the last routed group map to E (shared slot); their rows have weight 0 -> exact 0.
    tile_start = jnp.arange(n_routed_tiles, dtype=jnp.int32) * tm
    routed_tile_e = jnp.searchsorted(pcum, tile_start, side='right').astype(jnp.int32)
    tile_e = jnp.concatenate(
        [routed_tile_e, jnp.full((n_shared_tiles,), E, jnp.int32)])
    # per-tile non-empty flag (skip compute on fully-padded tiles)
    tile_ne = (row_w.reshape(n_tiles, tm).max(axis=1) > 0.0).astype(jnp.int32)

    xs = x2[gather_tok].astype(cdt)                                # (P, D) gathered rows
    gw = row_w.reshape(P, 1)

    w1c = w1.astype(cdt)
    w2c = w2.astype(cdt)
    b1r = b1.reshape(Ep1, 1, H).astype(jnp.float32)
    b2r = b2.reshape(Ep1, 1, D).astype(jnp.float32)

    vmem_limit = int(min(max(_vmem_est(tm, th) + (4 << 20), 32 << 20), vmem_cap_lim))

    cost = pl.CostEstimate(
        flops=4 * P * D * H,                                       # two matmuls per row
        transcendentals=P * H,                                     # one gelu per hidden elem
        bytes_accessed=(n_tiles * n_hchunks * 2 * D * th * isz     # streamed expert weights
                        + P * D * isz + P * D * osz + P * 4        # xs read, ys write, gw
                        + Ep1 * (H + D) * 4))                      # biases

    kern = functools.partial(_grouped_ffn_kernel, approx_gelu=approx_gelu)

    ys = pl.pallas_call(
        kern,
        out_shape=jax.ShapeDtypeStruct((P, D), odt),
        grid_spec=pltpu.PrefetchScalarGridSpec(
            num_scalar_prefetch=2,
            grid=(n_tiles, n_hchunks),
            in_specs=[
                pl.BlockSpec((tm, D), lambda i, hk, te, ne: (i, 0)),                        # xs
                pl.BlockSpec((tm, 1), lambda i, hk, te, ne: (i, 0)),                        # gate w
                pl.BlockSpec((pl.Squeezed(), D, th), lambda i, hk, te, ne: (te[i], 0, hk)), # w1[e]
                pl.BlockSpec((pl.Squeezed(), 1, th), lambda i, hk, te, ne: (te[i], 0, hk)), # b1[e]
                pl.BlockSpec((pl.Squeezed(), th, D), lambda i, hk, te, ne: (te[i], hk, 0)), # w2[e]
                pl.BlockSpec((pl.Squeezed(), 1, D), lambda i, hk, te, ne: (te[i], 0, 0)),   # b2[e]
            ],
            out_specs=pl.BlockSpec((tm, D), lambda i, hk, te, ne: (i, 0)),
            scratch_shapes=[pltpu.VMEM((tm, D), jnp.float32)],
        ),
        compiler_params=pltpu.CompilerParams(
            dimension_semantics=("parallel", "arbitrary"),
            vmem_limit_bytes=vmem_limit),
        cost_estimate=cost,
    )(tile_e, tile_ne, xs, gw, w1c, b1r, w2c, b2r)

    # scatter-add weighted expert outputs back to tokens (padding rows add exact zeros)
    y = jnp.zeros((T, D), jnp.float32).at[gather_tok].add(ys.astype(jnp.float32))
    return y.astype(x.dtype).reshape(B, S, D)


def reference_forward(x, wg, w1, b1, w2, b2, *, top_k):
    """Pure-JAX reference mirroring MoEBlock eval forward (dense routing)."""
    B, S, D = x.shape
    x2 = x.reshape(-1, D)
    E = wg.shape[0]
    logits = x2 @ wg.T
    scores = jax.nn.softmax(logits, axis=-1)
    topv, topi = jax.lax.top_k(scores, top_k)
    dense = jnp.zeros((x2.shape[0], E), jnp.float32)
    dense = dense.at[jnp.arange(x2.shape[0])[:, None], topi].set(topv)

    def ffn(xx, i):
        h = xx @ w1[i] + b1[i]
        h = 0.5 * h * (1.0 + jax.scipy.special.erf(h / jnp.sqrt(2.0)))
        return h @ w2[i] + b2[i]

    y = jnp.zeros_like(x2)
    for i in range(E):
        y = y + dense[:, i:i + 1] * ffn(x2, i)
    y = y + ffn(x2, E)          # shared expert
    return y.reshape(B, S, D)


def init_params(key, D, H, E):
    ks = jax.random.split(key, 5)
    s_in = 1.0 / np.sqrt(D)
    s_hid = 1.0 / np.sqrt(H)
    wg = jax.random.uniform(ks[0], (E, D), jnp.float32, -s_in, s_in)        # gate
    w1 = jax.random.uniform(ks[1], (E + 1, D, H), jnp.float32, -s_in, s_in)
    b1 = jax.random.uniform(ks[2], (E + 1, H), jnp.float32, -s_in, s_in)
    w2 = jax.random.uniform(ks[3], (E + 1, H, D), jnp.float32, -s_hid, s_hid)
    b2 = jax.random.uniform(ks[4], (E + 1, D), jnp.float32, -s_hid, s_hid)
    return wg, w1, b1, w2, b2


if __name__ == "__main__":
    B, S, D = 2, 8, 32          # batch, seq, dim
    H = 4 * D                   # FeedForward inner_dim default = dim * 4
    E = 8                       # num_experts
    TOP_K = 2                   # moe_top_k

    key = jax.random.PRNGKey(0)
    kx, kp = jax.random.split(key)
    x = jax.random.normal(kx, (B, S, D), jnp.float32)
    wg, w1, b1, w2, b2 = init_params(kp, D, H, E)

    y_ref = reference_forward(x, wg, w1, b1, w2, b2, top_k=TOP_K)

    # exact path (fp32 compute + erf GELU) at small tiles, comparable to the reference
    y = moe_block_forward(x, wg, w1, b1, w2, b2, top_k=TOP_K, tm=16, th=128,
                          compute_dtype=jnp.float32, approx_gelu=False)
    jax.block_until_ready(y)
    err = float(jnp.max(jnp.abs(y - y_ref)))
    assert err < 1e-3, f"fp32 max abs error too large: {err}"

    # default fast path: bf16 compute / bf16 writeback, tanh-GELU, default (auto-fit) tiles
    y16 = moe_block_forward(x, wg, w1, b1, w2, b2, top_k=TOP_K, approx_gelu=True)
    jax.block_until_ready(y16)
    err16 = float(jnp.max(jnp.abs(y16.astype(jnp.float32) - y_ref)))
    assert err16 < 0.25, f"bf16 max abs error too large: {err16}"

    print("KERNEL_OK")
</pallas_src>

<mosaic_0001>
module attributes {stable_mosaic.version = 11 : i64} {
  func.func @_grouped_ffn_kernel(%arg0: i32, %arg1: i32, %arg2: memref<11xi32, #tpu.memory_space<smem>>, %arg3: memref<11xi32, #tpu.memory_space<smem>>, %arg4: memref<16x32xf32, #tpu.memory_space<vmem>>, %arg5: memref<16x1xf32, #tpu.memory_space<vmem>>, %arg6: memref<1x32x128xf32, #tpu.memory_space<vmem>>, %arg7: memref<1x1x128xf32, #tpu.memory_space<vmem>>, %arg8: memref<1x128x32xf32, #tpu.memory_space<vmem>>, %arg9: memref<1x1x32xf32, #tpu.memory_space<vmem>>, %arg10: memref<16x32xf32, #tpu.memory_space<vmem>>, %arg11: memref<16x32xf32, #tpu.memory_space<vmem>>) attributes {dimension_semantics = [#tpu.dimension_semantics<parallel>, #tpu.dimension_semantics<arbitrary>], iteration_bounds = array<i64: 11, 1>, scalar_prefetch = 2 : i64, scratch_operands = 1 : i64, tpu.core_type = #tpu.core_type<tc>, window_params = [{transform_indices = @transform_0, window_bounds = array<i64: 16, 32>}, {transform_indices = @transform_1, window_bounds = array<i64: 16, 1>}, {transform_indices = @transform_2, window_bounds = array<i64: 1, 32, 128>}, {transform_indices = @transform_3, window_bounds = array<i64: 1, 1, 128>}, {transform_indices = @transform_4, window_bounds = array<i64: 1, 128, 32>}, {transform_indices = @transform_5, window_bounds = array<i64: 1, 1, 32>}, {transform_indices = @transform_6, window_bounds = array<i64: 16, 32>}]} {
    %0 = arith.index_cast %arg0 : i32 to index
    %1 = memref.load %arg3[%0] : memref<11xi32, #tpu.memory_space<smem>>
    %c0_i32 = arith.constant 0 : i32
    %2 = arith.cmpi sgt, %1, %c0_i32 : i32
    %3 = arith.extui %2 : i1 to i32
    %c0_i32_0 = arith.constant 0 : i32
    %4 = arith.cmpi ne, %3, %c0_i32_0 : i32
    scf.if %4 {
      %c0 = arith.constant 0 : index
      %c0_2 = arith.constant 0 : index
      %8 = vector.load %arg4[%c0, %c0_2] : memref<16x32xf32, #tpu.memory_space<vmem>>, vector<16x32xf32>
      %c0_3 = arith.constant 0 : index
      %c0_4 = arith.constant 0 : index
      %c0_5 = arith.constant 0 : index
      %9 = vector.load %arg6[%c0_3, %c0_4, %c0_5] : memref<1x32x128xf32, #tpu.memory_space<vmem>>, vector<1x32x128xf32>
      %10 = vector.shape_cast %9 : vector<1x32x128xf32> to vector<32x128xf32>
      %cst = arith.constant dense<0.000000e+00> : vector<16x128xf32>
      %11 = tpu.matmul %8, %10, %cst {dimension_numbers = #tpu.dot_dimension_numbers<[1], [0], [0], [1], [0, 0, 1, 1], [], []>} : vector<16x32xf32>, vector<32x128xf32>, vector<16x128xf32> -> vector<16x128xf32>
      %c0_6 = arith.constant 0 : index
      %c0_7 = arith.constant 0 : index
      %c0_8 = arith.constant 0 : index
      %12 = vector.load %arg7[%c0_6, %c0_7, %c0_8] : memref<1x1x128xf32, #tpu.memory_space<vmem>>, vector<1x1x128xf32>
      %13 = vector.shape_cast %12 : vector<1x1x128xf32> to vector<1x128xf32>
      %14 = vector.broadcast %13 : vector<1x128xf32> to vector<16x128xf32>
      %15 = arith.addf %11, %14 : vector<16x128xf32>
      %cst_9 = arith.constant 5.000000e-01 : f32
      %16 = vector.broadcast %cst_9 : f32 to vector<16x128xf32>
      %17 = arith.mulf %16, %15 : vector<16x128xf32>
      %cst_10 = arith.constant 0.707106769 : f32
      %18 = vector.broadcast %cst_10 : f32 to vector<16x128xf32>
      %19 = arith.mulf %15, %18 : vector<16x128xf32>
      %20 = math.erf %19 : vector<16x128xf32>
      %cst_11 = arith.constant 1.000000e+00 : f32
      %21 = vector.broadcast %cst_11 : f32 to vector<16x128xf32>
      %22 = arith.addf %21, %20 : vector<16x128xf32>
      %23 = arith.mulf %17, %22 : vector<16x128xf32>
      %c0_12 = arith.constant 0 : index
      %c0_13 = arith.constant 0 : index
      %c0_14 = arith.constant 0 : index
      %24 = vector.load %arg8[%c0_12, %c0_13, %c0_14] : memref<1x128x32xf32, #tpu.memory_space<vmem>>, vector<1x128x32xf32>
      %25 = vector.shape_cast %24 : vector<1x128x32xf32> to vector<128x32xf32>
      %cst_15 = arith.constant dense<0.000000e+00> : vector<16x32xf32>
      %26 = tpu.matmul %23, %25, %cst_15 {dimension_numbers = #tpu.dot_dimension_numbers<[1], [0], [0], [1], [0, 0, 1, 1], [], []>} : vector<16x128xf32>, vector<128x32xf32>, vector<16x32xf32> -> vector<16x32xf32>
      %c0_i32_16 = arith.constant 0 : i32
      %27 = arith.cmpi eq, %arg1, %c0_i32_16 : i32
      %28 = arith.extui %27 : i1 to i32
      %c0_i32_17 = arith.constant 0 : i32
      %29 = arith.cmpi ne, %28, %c0_i32_17 : i32
      scf.if %29 {
        %c0_22 = arith.constant 0 : index
        %c0_23 = arith.constant 0 : index
        %36 = vector.load %arg11[%c0_22, %c0_23] : memref<16x32xf32, #tpu.memory_space<vmem>>, vector<16x32xf32>
        tpu.vector_store %arg11[%c0_22, %c0_23], %26 {strides = array<i32>} : memref<16x32xf32, #tpu.memory_space<vmem>>, vector<16x32xf32>,
      } else {
      }
      %c0_i32_18 = arith.constant 0 : i32
      %30 = arith.cmpi sgt, %arg1, %c0_i32_18 : i32
      %31 = arith.extui %30 : i1 to i32
      %c0_i32_19 = arith.constant 0 : i32
      %32 = arith.cmpi ne, %31, %c0_i32_19 : i32
      scf.if %32 {
        %c0_22 = arith.constant 0 : index
        %c0_23 = arith.constant 0 : index
        %36 = vector.load %arg11[%c0_22, %c0_23] : memref<16x32xf32, #tpu.memory_space<vmem>>, vector<16x32xf32>
        %37 = arith.addf %36, %26 : vector<16x32xf32>
        %c0_24 = arith.constant 0 : index
        %c0_25 = arith.constant 0 : index
        %38 = vector.load %arg11[%c0_24, %c0_25] : memref<16x32xf32, #tpu.memory_space<vmem>>, vector<16x32xf32>
        tpu.vector_store %arg11[%c0_24, %c0_25], %37 {strides = array<i32>} : memref<16x32xf32, #tpu.memory_space<vmem>>, vector<16x32xf32>,
      } else {
      }
      %c0_i32_20 = arith.constant 0 : i32
      %33 = arith.cmpi eq, %arg1, %c0_i32_20 : i32
      %34 = arith.extui %33 : i1 to i32
      %c0_i32_21 = arith.constant 0 : i32
      %35 = arith.cmpi ne, %34, %c0_i32_21 : i32
      scf.if %35 {
        %c0_22 = arith.constant 0 : index
        %c0_23 = arith.constant 0 : index
        %36 = vector.load %arg11[%c0_22, %c0_23] : memref<16x32xf32, #tpu.memory_space<vmem>>, vector<16x32xf32>
        %c0_24 = arith.constant 0 : index
        %c0_25 = arith.constant 0 : index
        %c0_26 = arith.constant 0 : index
        %37 = vector.load %arg9[%c0_24, %c0_25, %c0_26] : memref<1x1x32xf32, #tpu.memory_space<vmem>>, vector<1x1x32xf32>
        %38 = vector.shape_cast %37 : vector<1x1x32xf32> to vector<1x32xf32>
        %39 = vector.broadcast %38 : vector<1x32xf32> to vector<16x32xf32>
        %40 = arith.addf %36, %39 : vector<16x32xf32>
        %c0_27 = arith.constant 0 : index
        %c0_28 = arith.constant 0 : index
        %41 = vector.load %arg5[%c0_27, %c0_28] : memref<16x1xf32, #tpu.memory_space<vmem>>, vector<16x1xf32>
        %42 = vector.broadcast %41 : vector<16x1xf32> to vector<16x32xf32>
        %43 = arith.mulf %40, %42 : vector<16x32xf32>
        %c0_29 = arith.constant 0 : index
        %c0_30 = arith.constant 0 : index
        %44 = vector.load %arg10[%c0_29, %c0_30] : memref<16x32xf32, #tpu.memory_space<vmem>>, vector<16x32xf32>
        tpu.vector_store %arg10[%c0_29, %c0_30], %43 {strides = array<i32>} : memref<16x32xf32, #tpu.memory_space<vmem>>, vector<16x32xf32>,
      } else {
      }
    } else {
    }
    %true = arith.constant true
    %5 = arith.xori %2, %true : i1
    %6 = arith.extui %5 : i1 to i32
    %c0_i32_1 = arith.constant 0 : i32
    %7 = arith.cmpi ne, %6, %c0_i32_1 : i32
    scf.if %7 {
      %c0_i32_2 = arith.constant 0 : i32
      %8 = arith.cmpi eq, %arg1, %c0_i32_2 : i32
      %9 = arith.extui %8 : i1 to i32
      %c0_i32_3 = arith.constant 0 : i32
      %10 = arith.cmpi ne, %9, %c0_i32_3 : i32
      scf.if %10 {
        %cst = arith.constant 0.000000e+00 : f32
        %11 = vector.broadcast %cst : f32 to vector<16x32xf32>
        %c0 = arith.constant 0 : index
        %c0_4 = arith.constant 0 : index
        %12 = vector.load %arg10[%c0, %c0_4] : memref<16x32xf32, #tpu.memory_space<vmem>>, vector<16x32xf32>
        tpu.vector_store %arg10[%c0, %c0_4], %11 {strides = array<i32>} : memref<16x32xf32, #tpu.memory_space<vmem>>, vector<16x32xf32>,
      } else {
      }
    } else {
    }
    return
  }
  func.func @transform_0(%arg0: i32, %arg1: i32, %arg2: memref<11xi32, #tpu.memory_space<smem>>, %arg3: memref<11xi32, #tpu.memory_space<smem>>) -> (i32, i32) {
    %c0_i32 = arith.constant 0 : i32
    %c0_i32_0 = arith.constant 0 : i32
    return %arg0, %c0_i32 : i32, i32
  }
  func.func @transform_1(%arg0: i32, %arg1: i32, %arg2: memref<11xi32, #tpu.memory_space<smem>>, %arg3: memref<11xi32, #tpu.memory_space<smem>>) -> (i32, i32) {
    %c0_i32 = arith.constant 0 : i32
    %c0_i32_0 = arith.constant 0 : i32
    return %arg0, %c0_i32 : i32, i32
  }
  func.func @transform_2(%arg0: i32, %arg1: i32, %arg2: memref<11xi32, #tpu.memory_space<smem>>, %arg3: memref<11xi32, #tpu.memory_space<smem>>) -> (i32, i32, i32) {
    %0 = arith.index_cast %arg0 : i32 to index
    %1 = memref.load %arg2[%0] : memref<11xi32, #tpu.memory_space<smem>>
    %c0_i32 = arith.constant 0 : i32
    %c0_i32_0 = arith.constant 0 : i32
    return %1, %c0_i32, %arg1 : i32, i32, i32
  }
  func.func @transform_3(%arg0: i32, %arg1: i32, %arg2: memref<11xi32, #tpu.memory_space<smem>>, %arg3: memref<11xi32, #tpu.memory_space<smem>>) -> (i32, i32, i32) {
    %0 = arith.index_cast %arg0 : i32 to index
    %1 = memref.load %arg2[%0] : memref<11xi32, #tpu.memory_space<smem>>
    %c0_i32 = arith.constant 0 : i32
    %c0_i32_0 = arith.constant 0 : i32
    return %1, %c0_i32, %arg1 : i32, i32, i32
  }
  func.func @transform_4(%arg0: i32, %arg1: i32, %arg2: memref<11xi32, #tpu.memory_space<smem>>, %arg3: memref<11xi32, #tpu.memory_space<smem>>) -> (i32, i32, i32) {
    %0 = arith.index_cast %arg0 : i32 to index
    %1 = memref.load %arg2[%0] : memref<11xi32, #tpu.memory_space<smem>>
    %c0_i32 = arith.constant 0 : i32
    %c0_i32_0 = arith.constant 0 : i32
    return %1, %arg1, %c0_i32 : i32, i32, i32
  }
  func.func @transform_5(%arg0: i32, %arg1: i32, %arg2: memref<11xi32, #tpu.memory_space<smem>>, %arg3: memref<11xi32, #tpu.memory_space<smem>>) -> (i32, i32, i32) {
    %0 = arith.index_cast %arg0 : i32 to index
    %1 = memref.load %arg2[%0] : memref<11xi32, #tpu.memory_space<smem>>
    %c0_i32 = arith.constant 0 : i32
    %c0_i32_0 = arith.constant 0 : i32
    %c0_i32_1 = arith.constant 0 : i32
    return %1, %c0_i32, %c0_i32_0 : i32, i32, i32
  }
  func.func @transform_6(%arg0: i32, %arg1: i32, %arg2: memref<11xi32, #tpu.memory_space<smem>>, %arg3: memref<11xi32, #tpu.memory_space<smem>>) -> (i32, i32) {
    %c0_i32 = arith.constant 0 : i32
    %c0_i32_0 = arith.constant 0 : i32
    return %arg0, %c0_i32 : i32, i32
  }
}

</mosaic_0001>

<llo_original>
// kernel: tpu_custom_call.1
$region0: #{tpu_custom_call.1}
  #allocation0 [shape = 'u32[]', space=smem, size = 0x4, offset = 0x4, fixed_abs, tag = 'smem constant byte address 0x4 - core index']
  #allocation1 [shape = 'u32[72,128]{1,0:T(1,128)}', space=vmem, size = 0x9000, scoped, tag = 'internal scratch']
  #allocation2 [shape = 'f32[16,32]{1,0:T(8,128)}', space=vmem, size = 0x2000, scoped, tag = 'scratch operand']
  #allocation3 [shape = 's32[1]{0}', space=sflag, size = 0x4, scoped, tag = 'scoped memory for tpu_custom_call.1']
  #allocation4 [shape = 'u8[512]{0}', space=smem, size = 0x200, scoped, tag = 'prefetched SMEM operand 0']
  #allocation5 [shape = 'u8[512]{0}', space=smem, size = 0x200, scoped, tag = 'prefetched SMEM operand 1']
  %s0 = inlined_call_operand.vmem [shape: s32[11], index: 0, kind: input, shape index: {}]
  %s1 = inlined_call_operand.vmem [shape: s32[11], index: 1, kind: input, shape index: {}]
  %s2 = inlined_call_operand.vmem [shape: f32[176,32], index: 2, kind: input, shape index: {}]
  %s3 = inlined_call_operand.vmem [shape: f32[176,1], index: 3, kind: input, shape index: {}]
  %s4 = inlined_call_operand.vmem [shape: f32[9,32,128], index: 4, kind: input, shape index: {}]
  %s5 = inlined_call_operand.vmem [shape: f32[9,1,128], index: 5, kind: input, shape index: {}]
  %s6 = inlined_call_operand.vmem [shape: f32[9,128,32], index: 6, kind: input, shape index: {}]
  %s7 = inlined_call_operand.vmem [shape: f32[9,1,32], index: 7, kind: input, shape index: {}]
  %s8 = inlined_call_operand.vmem [shape: f32[176,32], index: 8, kind: output, shape index: {}]
  %s9 = sld [smem:[#allocation0]]
  $region81: #{tpu_custom_call.1} parent=0
    _
  %s11 = ssub.s32 1, %s9
  %s12 = scalar_select 0, %s11, %s9
  %s14 = sshll.u32 %s0, 4
  %s15 = int_to_ptr.vmem [resolvable:$true] %s14
  %17 = dma.vmem_to_smem %s15, 16, [#allocation4], [#allocation3]
  %s19 = sshll.u32 %s1, 4
  %s20 = int_to_ptr.vmem [resolvable:$true] %s19
  %22 = dma.vmem_to_smem %s20, 16, [#allocation5], [#allocation3]
  %24 = dma.done [#allocation3], 32
  %25 = sfence
  loop: start=0, step=1, limit=13
  $region2: #{tpu_custom_call.1} parent=0 // loop_pre_header
    _
  $region3: #{tpu_custom_call.1} parent=0 // loop_header
    %s27 = sphi 0, %s31
    %p28 = scmp.ge.s32.totalorder %s27, 13
    %s34 = sphi 0, %s46
    %s35 = sphi 0, %s42
    %s36 = sphi 0, %s34
    %s37 = sphi 0, %s35
    %s38 = sphi 0, %s36
    %s39 = sphi 0, %s37
    %s49 = sphi 0, %s51
    %s52 = sphi 0, %s49
    %s53 = sphi 0, %s52
    %s69 = sphi 0, %s53
    %s75 = sphi 0, %s77
    %s78 = sphi 0, %s75
    %s79 = sphi 0, %s78
    %s95 = sphi 0, %s79
    %s105 = sphi 0, %s107
    %s108 = sphi 0, %s105
    %s109 = sphi 0, %s108
    %s125 = sphi 0, %s109
    %s135 = sphi 0, %s137
    %s138 = sphi 0, %s135
    %s139 = sphi 0, %s138
    %s155 = sphi 0, %s139
    %s165 = sphi 0, %s167
    %s168 = sphi 0, %s165
    %s169 = sphi 0, %s168
    %s185 = sphi 0, %s169
    %s193 = sphi 0, %s195
    %s196 = sphi 0, %s193
    %s197 = sphi 0, %s196
    %s213 = sphi 0, %s197
    %s219 = sphi 0, %s221
    %s222 = sphi 0, %s219
    %s223 = sphi 0, %s222
    %s239 = sphi 0, %s223
  $region4: #{tpu_custom_call.1} parent=0 // loop_header_branch
    %30 = sbr.rel (%p28) target = $region8
  $region5: #{tpu_custom_call.1} parent=0 // loop_body
    %s32 = ssub.s32 %s27, 1
    %s33 = ssub.s32 %s27, 2
    %s40 = sadd.s32 1, %s35
    %p41 = scmp.ge.s32.totalorder %s40, 1
    %s42 = scalar_select %p41, 0, %s40
    %s43 = sadd.s32 1, %s34
    %s44 = scalar_select %p41, %s43, %s34
    %p45 = scmp.ge.s32.totalorder %s44, 11
    %s46 = scalar_select %p45, 0, %s44
    %s47 = ssub.s32 %s34, %s46
    %p48 = scmp.eq.s32.totalorder %s47, 0
    %s50 = sadd.s32 %s49, 1
    %s51 = scalar_select %p48, %s49, %s50
    %p54 = pneg %p48
    %p55 = scmp.eq.s32.totalorder %s27, 10
    %p56 = por %p54, %p55
    %p57 = scmp.ne.s32.totalorder %s49, %s52
    %p58 = scmp.eq.s32.totalorder %s27, 0
    %p59 = por %p57, %p58
    %p60 = scmp.ne.s32.totalorder %s49, %s52
    %p61 = scmp.eq.s32.totalorder %s32, 10
    %p62 = por %p60, %p61
    %p63 = scmp.ne.s32.totalorder %s52, %s53
    %p64 = scmp.eq.s32.totalorder %s32, 0
    %p65 = por %p63, %p64
    %p66 = scmp.ne.s32.totalorder %s52, %s53
    %p67 = scmp.eq.s32.totalorder %s33, 10
    %p68 = por %p66, %p67
    %p70 = scmp.ne.s32.totalorder %s53, %s69
    %p71 = scmp.eq.s32.totalorder %s33, 0
    %p72 = por %p70, %p71
    %s73 = ssub.s32 %s34, %s46
    %p74 = scmp.eq.s32.totalorder %s73, 0
    %s76 = sadd.s32 %s75, 1
    %s77 = scalar_select %p74, %s75, %s76
    %p80 = pneg %p74
    %p81 = scmp.eq.s32.totalorder %s27, 10
    %p82 = por %p80, %p81
    %p83 = scmp.ne.s32.totalorder %s75, %s78
    %p84 = scmp.eq.s32.totalorder %s27, 0
    %p85 = por %p83, %p84
    %p86 = scmp.ne.s32.totalorder %s75, %s78
    %p87 = scmp.eq.s32.totalorder %s32, 10
    %p88 = por %p86, %p87
    %p89 = scmp.ne.s32.totalorder %s78, %s79
    %p90 = scmp.eq.s32.totalorder %s32, 0
    %p91 = por %p89, %p90
    %p92 = scmp.ne.s32.totalorder %s78, %s79
    %p93 = scmp.eq.s32.totalorder %s33, 10
    %p94 = por %p92, %p93
    %p96 = scmp.ne.s32.totalorder %s79, %s95
    %p97 = scmp.eq.s32.totalorder %s33, 0
    %p98 = por %p96, %p97
    %s99 = sld [smem:[#allocation4 + %s34]]
    %s100 = sld [smem:[#allocation4 + %s46]]
    %s101 = ssub.s32 %s99, %s100
    %s102 = ssub.s32 %s35, %s42
    %s103 = sor.u32 %s101, %s102
    %p104 = scmp.eq.s32.totalorder %s103, 0
    %s106 = sadd.s32 %s105, 1
    %s107 = scalar_select %p104, %s105, %s106
    %p110 = pneg %p104
    %p111 = scmp.eq.s32.totalorder %s27, 10
    %p112 = por %p110, %p111
    %p113 = scmp.ne.s32.totalorder %s105, %s108
    %p114 = scmp.eq.s32.totalorder %s27, 0
    %p115 = por %p113, %p114
    %p116 = scmp.ne.s32.totalorder %s105, %s108
    %p117 = scmp.eq.s32.totalorder %s32, 10
    %p118 = por %p116, %p117
    %p119 = scmp.ne.s32.totalorder %s108, %s109
    %p120 = scmp.eq.s32.totalorder %s32, 0
    %p121 = por %p119, %p120
    %p122 = scmp.ne.s32.totalorder %s108, %s109
    %p123 = scmp.eq.s32.totalorder %s33, 10
    %p124 = por %p122, %p123
    %p126 = scmp.ne.s32.totalorder %s109, %s125
    %p127 = scmp.eq.s32.totalorder %s33, 0
    %p128 = por %p126, %p127
    %s129 = sld [smem:[#allocation4 + %s34]]
    %s130 = sld [smem:[#allocation4 + %s46]]
    %s131 = ssub.s32 %s129, %s130
    %s132 = ssub.s32 %s35, %s42
    %s133 = sor.u32 %s131, %s132
    %p134 = scmp.eq.s32.totalorder %s133, 0
    %s136 = sadd.s32 %s135, 1
    %s137 = scalar_select %p134, %s135, %s136
    %p140 = pneg %p134
    %p141 = scmp.eq.s32.totalorder %s27, 10
    %p142 = por %p140, %p141
    %p143 = scmp.ne.s32.totalorder %s135, %s138
    %p144 = scmp.eq.s32.totalorder %s27, 0
    %p145 = por %p143, %p144
    %p146 = scmp.ne.s32.totalorder %s135, %s138
    %p147 = scmp.eq.s32.totalorder %s32, 10
    %p148 = por %p146, %p147
    %p149 = scmp.ne.s32.totalorder %s138, %s139
    %p150 = scmp.eq.s32.totalorder %s32, 0
    %p151 = por %p149, %p150
    %p152 = scmp.ne.s32.totalorder %s138, %s139
    %p153 = scmp.eq.s32.totalorder %s33, 10
    %p154 = por %p152, %p153
    %p156 = scmp.ne.s32.totalorder %s139, %s155
    %p157 = scmp.eq.s32.totalorder %s33, 0
    %p158 = por %p156, %p157
    %s159 = sld [smem:[#allocation4 + %s34]]
    %s160 = sld [smem:[#allocation4 + %s46]]
    %s161 = ssub.s32 %s159, %s160
    %s162 = ssub.s32 %s35, %s42
    %s163 = sor.u32 %s161, %s162
    %p164 = scmp.eq.s32.totalorder %s163, 0
    %s166 = sadd.s32 %s165, 1
    %s167 = scalar_select %p164, %s165, %s166
    %p170 = pneg %p164
    %p171 = scmp.eq.s32.totalorder %s27, 10
    %p172 = por %p170, %p171
    %p173 = scmp.ne.s32.totalorder %s165, %s168
    %p174 = scmp.eq.s32.totalorder %s27, 0
    %p175 = por %p173, %p174
    %p176 = scmp.ne.s32.totalorder %s165, %s168
    %p177 = scmp.eq.s32.totalorder %s32, 10
    %p178 = por %p176, %p177
    %p179 = scmp.ne.s32.totalorder %s168, %s169
    %p180 = scmp.eq.s32.totalorder %s32, 0
    %p181 = por %p179, %p180
    %p182 = scmp.ne.s32.totalorder %s168, %s169
    %p183 = scmp.eq.s32.totalorder %s33, 10
    %p184 = por %p182, %p183
    %p186 = scmp.ne.s32.totalorder %s169, %s185
    %p187 = scmp.eq.s32.totalorder %s33, 0
    %p188 = por %p186, %p187
    %s189 = sld [smem:[#allocation4 + %s34]]
    %s190 = sld [smem:[#allocation4 + %s46]]
    %s191 = ssub.s32 %s189, %s190
    %p192 = scmp.eq.s32.totalorder %s191, 0
    %s194 = sadd.s32 %s193, 1
    %s195 = scalar_select %p192, %s193, %s194
    %p198 = pneg %p192
    %p199 = scmp.eq.s32.totalorder %s27, 10
    %p200 = por %p198, %p199
    %p201 = scmp.ne.s32.totalorder %s193, %s196
    %p202 = scmp.eq.s32.totalorder %s27, 0
    %p203 = por %p201, %p202
    %p204 = scmp.ne.s32.totalorder %s193, %s196
    %p205 = scmp.eq.s32.totalorder %s32, 10
    %p206 = por %p204, %p205
    %p207 = scmp.ne.s32.totalorder %s196, %s197
    %p208 = scmp.eq.s32.totalorder %s32, 0
    %p209 = por %p207, %p208
    %p210 = scmp.ne.s32.totalorder %s196, %s197
    %p211 = scmp.eq.s32.totalorder %s33, 10
    %p212 = por %p210, %p211
    %p214 = scmp.ne.s32.totalorder %s197, %s213
    %p215 = scmp.eq.s32.totalorder %s33, 0
    %p216 = por %p214, %p215
    %s217 = ssub.s32 %s34, %s46
    %p218 = scmp.eq.s32.totalorder %s217, 0
    %s220 = sadd.s32 %s219, 1
    %s221 = scalar_select %p218, %s219, %s220
    %p224 = pneg %p218
    %p225 = scmp.eq.s32.totalorder %s27, 10
    %p226 = por %p224, %p225
    %p227 = scmp.ne.s32.totalorder %s219, %s222
    %p228 = scmp.eq.s32.totalorder %s27, 0
    %p229 = por %p227, %p228
    %p230 = scmp.ne.s32.totalorder %s219, %s222
    %p231 = scmp.eq.s32.totalorder %s32, 10
    %p232 = por %p230, %p231
    %p233 = scmp.ne.s32.totalorder %s222, %s223
    %p234 = scmp.eq.s32.totalorder %s32, 0
    %p235 = por %p233, %p234
    %p236 = scmp.ne.s32.totalorder %s222, %s223
    %p237 = scmp.eq.s32.totalorder %s33, 10
    %p238 = por %p236, %p237
    %p240 = scmp.ne.s32.totalorder %s223, %s239
    %p241 = scmp.eq.s32.totalorder %s33, 0
    %p242 = por %p240, %p241
    %p243 = scmp.le.s32.totalorder 1, %s27
    %p244 = scmp.lt.s32.totalorder %s27, 12
    %p245 = pnand %p243, %p244
    %p246 = pneg %p245
    // Predicated region
    $region9: #{tpu_custom_call.1} parent=5 // pred_check
      _
    $region10: #{tpu_custom_call.1} parent=5 // pred_check_branch
      %248 = sbr.rel (%p245) target = $region12
    $region11: #{tpu_custom_call.1} parent=5 // pred_region
      %s249 = ssub.s32 %s27, 1
    $region12: #{tpu_custom_call.1} parent=5 // pred_fallthru
      _
    %p250 = scmp.lt.s32.totalorder %s27, 11
    // Predicated region
    $region13: #{tpu_custom_call.1} parent=5 // pred_check
      %p251 = pneg %p250
    $region14: #{tpu_custom_call.1} parent=5 // pred_check_branch
      %253 = sbr.rel (%p251) target = $region16
    $region15: #{tpu_custom_call.1} parent=5 // pred_region
      // Predicated region
      $region17: #{tpu_custom_call.1} parent=15 // pred_check
        %p254 = pneg %p59
      $region18: #{tpu_custom_call.1} parent=15 // pred_check_branch
        %256 = sbr.rel (%p254) target = $region20
      $region19: #{tpu_custom_call.1} parent=15 // pred_region
        %s257 = smul.u32 2, %s34
        %p258 = scmp.lt.s32.totalorder %s257, 21
        %s259 = scalar_select %p258, %s257, 21
        %s260 = smul.addr %s259, 8
        %s261 = scalar_lea.vmem %s2, %s260
        %s262 = smul.u32 2, %s34
      $region20: #{tpu_custom_call.1} parent=15 // pred_fallthru
        _
      // Predicated region
      $region21: #{tpu_custom_call.1} parent=15 // pred_check
        %p263 = pneg %p85
      $region22: #{tpu_custom_call.1} parent=15 // pred_check_branch
        %265 = sbr.rel (%p263) target = $region24
      $region23: #{tpu_custom_call.1} parent=15 // pred_region
        %s266 = smul.u32 2, %s34
        %p267 = scmp.lt.s32.totalorder %s266, 21
        %s268 = scalar_select %p267, %s266, 21
        %s269 = smul.addr %s268, 8
        %s270 = scalar_lea.vmem %s3, %s269
        %s271 = smul.u32 2, %s34
      $region24: #{tpu_custom_call.1} parent=15 // pred_fallthru
        _
      // Predicated region
      $region25: #{tpu_custom_call.1} parent=15 // pred_check
        %p272 = pneg %p115
      $region26: #{tpu_custom_call.1} parent=15 // pred_check_branch
        %274 = sbr.rel (%p272) target = $region28
      $region27: #{tpu_custom_call.1} parent=15 // pred_region
        %s275 = sld [smem:[#allocation4 + %s34]]
        %p276 = scmp.lt.s32.totalorder %s275, 8
        %s277 = scalar_select %p276, %s275, 8
        %p278 = scmp.lt.s32.totalorder %s35, 0
        %s279 = scalar_select %p278, %s35, 0
        %s280 = smul.addr %s277, 4
        %s281 = sadd.s32 %s279, %s280
        %s282 = smul.addr %s281, 8
        %s283 = scalar_lea.vmem %s4, %s282
        %s284 = sld [smem:[#allocation4 + %s34]]
      $region28: #{tpu_custom_call.1} parent=15 // pred_fallthru
        _
      // Predicated region
      $region29: #{tpu_custom_call.1} parent=15 // pred_check
        %p285 = pneg %p145
      $region30: #{tpu_custom_call.1} parent=15 // pred_check_branch
        %287 = sbr.rel (%p285) target = $region32
      $region31: #{tpu_custom_call.1} parent=15 // pred_region
        %s288 = sld [smem:[#allocation4 + %s34]]
        %p289 = scmp.lt.s32.totalorder %s288, 8
        %s290 = scalar_select %p289, %s288, 8
        %p291 = scmp.lt.s32.totalorder %s35, 0
        %s292 = scalar_select %p291, %s35, 0
        %s293 = sadd.s32 %s292, %s290
        %s294 = scalar_lea.vmem %s5, %s293
        %s295 = sld [smem:[#allocation4 + %s34]]
      $region32: #{tpu_custom_call.1} parent=15 // pred_fallthru
        _
      // Predicated region
      $region33: #{tpu_custom_call.1} parent=15 // pred_check
        %p296 = pneg %p175
      $region34: #{tpu_custom_call.1} parent=15 // pred_check_branch
        %298 = sbr.rel (%p296) target = $region36
      $region35: #{tpu_custom_call.1} parent=15 // pred_region
        %s299 = sld [smem:[#allocation4 + %s34]]
        %s300 = smul.u32 16, %s35
        %p301 = scmp.lt.s32.totalorder %s299, 8
        %s302 = scalar_select %p301, %s299, 8
        %p303 = scmp.lt.s32.totalorder %s300, 15
        %s304 = scalar_select %p303, %s300, 15
        %s305 = smul.addr %s302, 16
        %s306 = sadd.s32 %s304, %s305
        %s307 = smul.addr %s306, 8
        %s308 = scalar_lea.vmem %s6, %s307
        %s309 = sld [smem:[#allocation4 + %s34]]
        %s310 = smul.u32 16, %s35
      $region36: #{tpu_custom_call.1} parent=15 // pred_fallthru
        _
      // Predicated region
      $region37: #{tpu_custom_call.1} parent=15 // pred_check
        %p311 = pneg %p203
      $region38: #{tpu_custom_call.1} parent=15 // pred_check_branch
        %313 = sbr.rel (%p311) target = $region40
      $region39: #{tpu_custom_call.1} parent=15 // pred_region
        %s314 = sld [smem:[#allocation4 + %s34]]
        %p315 = scmp.lt.s32.totalorder %s314, 8
        %s316 = scalar_select %p315, %s314, 8
        %s317 = scalar_lea.vmem %s7, %s316
        %s318 = sld [smem:[#allocation4 + %s34]]
      $region40: #{tpu_custom_call.1} parent=15 // pred_fallthru
        _
    $region16: #{tpu_custom_call.1} parent=5 // pred_fallthru
      _
    %p319 = scmp.le.s32.totalorder 1, %s27
    %p320 = scmp.lt.s32.totalorder %s27, 12
    %p321 = pnand %p319, %p320
    %p322 = pneg %p321
    // Predicated region
    $region41: #{tpu_custom_call.1} parent=5 // pred_check
      _
    $region42: #{tpu_custom_call.1} parent=5 // pred_check_branch
      %324 = sbr.rel (%p321) target = $region44
    $region43: #{tpu_custom_call.1} parent=5 // pred_region
      %s325 = ssub.s32 %s27, 1
      %s326 = smul.u32 2, %s36
      %p327 = scmp.lt.s32.totalorder %s326, 21
      %s328 = scalar_select %p327, %s326, 21
      %s329 = smul.addr %s328, 8
      %s330 = scalar_lea.vmem %s2, %s329
      %p331 = pneg %p65
      %p332 = pneg %p62
      %s333 = smul.u32 2, %s36
      %p334 = scmp.lt.s32.totalorder %s333, 21
      %s335 = scalar_select %p334, %s333, 21
      %s336 = smul.addr %s335, 8
      %s337 = scalar_lea.vmem %s3, %s336
      %p338 = pneg %p91
      %p339 = pneg %p88
      %s340 = sld [smem:[#allocation4 + %s36]]
      %p341 = scmp.lt.s32.totalorder %s340, 8
      %s342 = scalar_select %p341, %s340, 8
      %p343 = scmp.lt.s32.totalorder %s37, 0
      %s344 = scalar_select %p343, %s37, 0
      %s345 = smul.addr %s342, 4
      %s346 = sadd.s32 %s344, %s345
      %s347 = smul.addr %s346, 8
      %s348 = scalar_lea.vmem %s4, %s347
      %p349 = pneg %p121
      %p350 = pneg %p118
      %s351 = sld [smem:[#allocation4 + %s36]]
      %p352 = scmp.lt.s32.totalorder %s351, 8
      %s353 = scalar_select %p352, %s351, 8
      %p354 = scmp.lt.s32.totalorder %s37, 0
      %s355 = scalar_select %p354, %s37, 0
      %s356 = sadd.s32 %s355, %s353
      %s357 = scalar_lea.vmem %s5, %s356
      %p358 = pneg %p151
      %p359 = pneg %p148
      %s360 = sld [smem:[#allocation4 + %s36]]
      %s361 = smul.u32 16, %s37
      %p362 = scmp.lt.s32.totalorder %s360, 8
      %s363 = scalar_select %p362, %s360, 8
      %p364 = scmp.lt.s32.totalorder %s361, 15
      %s365 = scalar_select %p364, %s361, 15
      %s366 = smul.addr %s363, 16
      %s367 = sadd.s32 %s365, %s366
      %s368 = smul.addr %s367, 8
      %s369 = scalar_lea.vmem %s6, %s368
      %p370 = pneg %p181
      %p371 = pneg %p178
      %s372 = sld [smem:[#allocation4 + %s36]]
      %p373 = scmp.lt.s32.totalorder %s372, 8
      %s374 = scalar_select %p373, %s372, 8
      %s375 = scalar_lea.vmem %s7, %s374
      %p376 = pneg %p209
      %p377 = pneg %p206
      %p378 = pneg %p235
      %p379 = pneg %p232
      %s380 = smul.u32 2, %s36
      %p381 = scmp.lt.s32.totalorder %s380, 21
      %s382 = scalar_select %p381, %s380, 21
      %s383 = smul.addr %s382, 8
      %s384 = scalar_lea.vmem %s8, %s383
      %s385 = smul.u32 2, %s36
      %p386 = scmp.lt.s32.totalorder %s385, 21
      %s387 = scalar_select %p386, %s385, 21
      %s388 = smul.addr %s387, 8
      %s389 = scalar_lea.vmem %s2, %s388
      %s390 = smul.u32 2, %s36
      %s391 = smul.u32 2, %s36
      %p392 = scmp.lt.s32.totalorder %s391, 21
      %s393 = scalar_select %p392, %s391, 21
      %s394 = smul.addr %s393, 8
      %s395 = scalar_lea.vmem %s3, %s394
      %s396 = smul.u32 2, %s36
      %s397 = sld [smem:[#allocation4 + %s36]]
      %p398 = scmp.lt.s32.totalorder %s397, 8
      %s399 = scalar_select %p398, %s397, 8
      %p400 = scmp.lt.s32.totalorder %s37, 0
      %s401 = scalar_select %p400, %s37, 0
      %s402 = smul.addr %s399, 4
      %s403 = sadd.s32 %s401, %s402
      %s404 = smul.addr %s403, 8
      %s405 = scalar_lea.vmem %s4, %s404
      %s406 = sld [smem:[#allocation4 + %s36]]
      %s407 = sld [smem:[#allocation4 + %s36]]
      %p408 = scmp.lt.s32.totalorder %s407, 8
      %s409 = scalar_select %p408, %s407, 8
      %p410 = scmp.lt.s32.totalorder %s37, 0
      %s411 = scalar_select %p410, %s37, 0
      %s412 = sadd.s32 %s411, %s409
      %s413 = scalar_lea.vmem %s5, %s412
      %s414 = sld [smem:[#allocation4 + %s36]]
      %s415 = sld [smem:[#allocation4 + %s36]]
      %s416 = smul.u32 16, %s37
      %p417 = scmp.lt.s32.totalorder %s415, 8
      %s418 = scalar_select %p417, %s415, 8
      %p419 = scmp.lt.s32.totalorder %s416, 15
      %s420 = scalar_select %p419, %s416, 15
      %s421 = smul.addr %s418, 16
      %s422 = sadd.s32 %s420, %s421
      %s423 = smul.addr %s422, 8
      %s424 = scalar_lea.vmem %s6, %s423
      %s425 = sld [smem:[#allocation4 + %s36]]
      %s426 = smul.u32 16, %s37
      %s427 = sld [smem:[#allocation4 + %s36]]
      %p428 = scmp.lt.s32.totalorder %s427, 8
      %s429 = scalar_select %p428, %s427, 8
      %s430 = scalar_lea.vmem %s7, %s429
      %s431 = sld [smem:[#allocation4 + %s36]]
      %s432 = smul.u32 2, %s36
      %p433 = scmp.lt.s32.totalorder %s432, 21
      %s434 = scalar_select %p433, %s432, 21
      %s435 = smul.addr %s434, 8
      %s436 = scalar_lea.vmem %s8, %s435
      %s437 = smul.u32 2, %s36
      %s438 = sld [smem:[#allocation5 + %s36]]
      %p439 = scmp.gt.s32.totalorder %s438, 0
      // Predicated region
      $region45: #{tpu_custom_call.1} parent=43 // pred_check
        %p440 = pneg %p439
      $region46: #{tpu_custom_call.1} parent=43 // pred_check_branch
        %442 = sbr.rel (%p440) target = $region48
      $region47: #{tpu_custom_call.1} parent=43 // pred_region
        %v443 = vld [vmem:[%s389] sm:$0xff]
        %v444 = vld [vmem:[%s389 + $0x8] sm:$0xff]
        %v445 = vld [vmem:[%s405] sm:$0xff]
        %v446 = vld [vmem:[%s405 + $0x8] sm:$0xff]
        %v447 = vld [vmem:[%s405 + $0x10] sm:$0xff]
        %v448 = vld [vmem:[%s405 + $0x18] sm:$0xff]
        %v449 = vld [vmem:[%s413] sm:$0x1]
        %v451 = vperm.slane %v449, 0
        %vm453 = vcmask 261120
        %v455 = vsel %vm453, %v443, 0
        %v458 = vsel %vm453, %v444, 0
        %460 = vmatpush.msra.mxu0 0.0
        %461 = vmatpush.msra.mxu0 0.0
        %462 = vmatpush.msra.mxu0 0.0
        %463 = vmatpush.msra.mxu0 0.0
        %464 = vmatpush.msra.mxu0 0.0
        %465 = vmatpush.msra.mxu0 0.0
        %466 = vmatpush.msra.mxu0 0.0
        %467 = vmatpush.msra.mxu0 0.0
        %468 = vmatpush.msra.mxu0 0.0
        %469 = vmatpush.msra.mxu0 0.0
        %470 = vmatpush.msra.mxu0 0.0
        %471 = vmatpush.msra.mxu0 0.0
        %472 = vmatpush.msra.mxu0 %v448
        %473 = vmatpush.msra.mxu0 %v447
        %474 = vmatpush.msra.mxu0 %v446
        %475 = vmatpush.msra.mxu0 %v445
        %476 = vmatmul.f32.gmra.mxu0 %v455
        %v477 = vpop.f32.mrf.mxu0
        %v478 = vadd.f32 %v451, %v477
        %479 = vmatmul.f32.gmra.mxu0 %v458
        %v480 = vpop.f32.mrf.mxu0
        %v481 = vadd.f32 %v451, %v480
        %482 = vdwg.mxu0
        %v483 = vmul.f32 %v478, 0.5
        %v484 = vmul.f32 %v481, 0.5
        %v485 = vmul.f32 %v478, 0.70710677
        %v486 = vmul.f32 %v481, 0.70710677
        %v487 = vmul.f32 %v485, %v485
        %v488 = vmin.f32 16.0, %v487
        %v489 = vmul.f32 %v488, 2.1237322e-06
        %v490 = vadd.f32 %v489, 0.00028619796
        %v491 = vmul.f32 %v488, %v490
        %v492 = vadd.f32 %v491, 0.0036580483
        %v493 = vmul.f32 %v488, %v492
        %v494 = vadd.f32 %v493, 0.05243302
        %v495 = vmul.f32 %v488, %v494
        %v496 = vadd.f32 %v495, 0.18741608
        %v497 = vmul.f32 %v488, %v496
        %v498 = vadd.f32 %v497, 1.1283791
        %v499 = vmul.f32 %v485, %v498
        %v500 = vmul.f32 %v488, 3.8918573e-05
        %v501 = vadd.f32 %v500, 0.001143296
        %v502 = vmul.f32 %v488, %v501
        %v503 = vadd.f32 %v502, 0.014752088
        %v504 = vmul.f32 %v488, %v503
        %v505 = vadd.f32 %v504, 0.112945676
        %v506 = vmul.f32 %v488, %v505
        %v507 = vadd.f32 %v506, 0.4994258
        %v508 = vmul.f32 %v488, %v507
        %v509 = vadd.f32 %v508, 1.0
        %v510 = vrcp.pop %v509
        %v511 = vmul.f32 %v509, %v510
        %v512 = vsub.f32 1.0, %v511
        %v513 = vmul.f32 %v510, %v512
        %v514 = vadd.f32 %v510, %v513
        %vm515 = vweird.f32 %v509
        %vm516 = vweird.f32 %v510
        %vm517 = vmor %vm515, %vm516
        %v518 = vsel %vm517, %v510, %v514
        %v519 = vand.u32 2147483647, %v509
        %vm520 = vcmp.eq.f32.partialorder %v519, 8.507059e+37
        %v521 = vand.u32 %v509, 2147483648
        %v522 = vor.u32 1.1754944e-38, %v521
        %v523 = vsel %vm520, %v522, %v518
        %v524 = vmul.f32 %v499, %v523
        %v525 = vmin.f32 %v524, 1.0
        %v526 = vmax.f32 %v525, -1.0
        %v527 = vmul.f32 %v486, %v486
        %v528 = vmin.f32 16.0, %v527
        %v529 = vmul.f32 %v528, 2.1237322e-06
        %v530 = vadd.f32 %v529, 0.00028619796
        %v531 = vmul.f32 %v528, %v530
        %v532 = vadd.f32 %v531, 0.0036580483
        %v533 = vmul.f32 %v528, %v532
        %v534 = vadd.f32 %v533, 0.05243302
        %v535 = vmul.f32 %v528, %v534
        %v536 = vadd.f32 %v535, 0.18741608
        %v537 = vmul.f32 %v528, %v536
        %v538 = vadd.f32 %v537, 1.1283791
        %v539 = vmul.f32 %v486, %v538
        %v540 = vmul.f32 %v528, 3.8918573e-05
        %v541 = vadd.f32 %v540, 0.001143296
        %v542 = vmul.f32 %v528, %v541
        %v543 = vadd.f32 %v542, 0.014752088
        %v544 = vmul.f32 %v528, %v543
        %v545 = vadd.f32 %v544, 0.112945676
        %v546 = vmul.f32 %v528, %v545
        %v547 = vadd.f32 %v546, 0.4994258
        %v548 = vmul.f32 %v528, %v547
        %v549 = vadd.f32 %v548, 1.0
        %v550 = vrcp.pop %v549
        %v551 = vmul.f32 %v549, %v550
        %v552 = vsub.f32 1.0, %v551
        %v553 = vmul.f32 %v550, %v552
        %v554 = vadd.f32 %v550, %v553
        %vm555 = vweird.f32 %v549
        %vm556 = vweird.f32 %v550
        %vm557 = vmor %vm555, %vm556
        %v558 = vsel %vm557, %v550, %v554
        %v559 = vand.u32 2147483647, %v549
        %vm560 = vcmp.eq.f32.partialorder %v559, 8.507059e+37
        %v561 = vand.u32 %v549, 2147483648
        %v562 = vor.u32 1.1754944e-38, %v561
        %v563 = vsel %vm560, %v562, %v558
        %v564 = vmul.f32 %v539, %v563
        %v565 = vmin.f32 %v564, 1.0
        %v566 = vmax.f32 %v565, -1.0
        %v567 = vadd.f32 %v526, 1.0
        %v568 = vadd.f32 %v566, 1.0
        %v569 = vmul.f32 %v483, %v567
        %v570 = vmul.f32 %v484, %v568
        %v571 = vld [vmem:[%s424] sm:$0xff]
        %v572 = vld [vmem:[%s424 + $0x8] sm:$0xff]
        %v573 = vld [vmem:[%s424 + $0x10] sm:$0xff]
        %v574 = vld [vmem:[%s424 + $0x18] sm:$0xff]
        %v575 = vld [vmem:[%s424 + $0x20] sm:$0xff]
        %v576 = vld [vmem:[%s424 + $0x28] sm:$0xff]
        %v577 = vld [vmem:[%s424 + $0x30] sm:$0xff]
        %v578 = vld [vmem:[%s424 + $0x38] sm:$0xff]
        %v579 = vld [vmem:[%s424 + $0x40] sm:$0xff]
        %v580 = vld [vmem:[%s424 + $0x48] sm:$0xff]
        %v581 = vld [vmem:[%s424 + $0x50] sm:$0xff]
        %v582 = vld [vmem:[%s424 + $0x58] sm:$0xff]
        %v583 = vld [vmem:[%s424 + $0x60] sm:$0xff]
        %v584 = vld [vmem:[%s424 + $0x68] sm:$0xff]
        %v585 = vld [vmem:[%s424 + $0x70] sm:$0xff]
        %v586 = vld [vmem:[%s424 + $0x78] sm:$0xff]
        %587 = vmatpush.msra.mxu0 %v586
        %588 = vmatpush.msra.mxu0 %v585
        %589 = vmatpush.msra.mxu0 %v584
        %590 = vmatpush.msra.mxu0 %v583
        %591 = vmatpush.msra.mxu0 %v582
        %592 = vmatpush.msra.mxu0 %v581
        %593 = vmatpush.msra.mxu0 %v580
        %594 = vmatpush.msra.mxu0 %v579
        %595 = vmatpush.msra.mxu0 %v578
        %596 = vmatpush.msra.mxu0 %v577
        %597 = vmatpush.msra.mxu0 %v576
        %598 = vmatpush.msra.mxu0 %v575
        %599 = vmatpush.msra.mxu0 %v574
        %600 = vmatpush.msra.mxu0 %v573
        %601 = vmatpush.msra.mxu0 %v572
        %602 = vmatpush.msra.mxu0 %v571
        %603 = vmatmul.f32.gmra.mxu0 %v569
        %v604 = vpop.f32.mrf.mxu0
        %v605 = vadd.f32 0.0, %v604
        %606 = vmatmul.f32.gmra.mxu0 %v570
        %v607 = vpop.f32.mrf.mxu0
        %v608 = vadd.f32 0.0, %v607
        %609 = vdwg.mxu0
        %p610 = scmp.eq.s32.totalorder %s37, 0
        // Predicated region
        $region49: #{tpu_custom_call.1} parent=47 // pred_check
          %p611 = pneg %p610
        $region50: #{tpu_custom_call.1} parent=47 // pred_check_branch
          %613 = sbr.rel (%p611) target = $region52
        $region51: #{tpu_custom_call.1} parent=47 // pred_region
          %614 = vst.msk [vmem:[#allocation2] sm:$0xff] %vm453, %v605
          %615 = vst.msk [vmem:[#allocation2 + $0x8] sm:$0xff] %vm453, %v608
        $region52: #{tpu_custom_call.1} parent=47 // pred_fallthru
          _
        %p616 = scmp.gt.s32.totalorder %s37, 0
        // Predicated region
        $region53: #{tpu_custom_call.1} parent=47 // pred_check
          %p617 = pneg %p616
        $region54: #{tpu_custom_call.1} parent=47 // pred_check_branch
          %619 = sbr.rel (%p617) target = $region56
        $region55: #{tpu_custom_call.1} parent=47 // pred_region
          %v620 = vld [vmem:[#allocation2] sm:$0xff]
          %v621 = vld [vmem:[#allocation2 + $0x8] sm:$0xff]
          %v622 = vadd.f32 %v620, %v605
          %v623 = vadd.f32 %v621, %v608
          %624 = vst.msk [vmem:[#allocation2] sm:$0xff] %vm453, %v622
          %625 = vst.msk [vmem:[#allocation2 + $0x8] sm:$0xff] %vm453, %v623
        $region56: #{tpu_custom_call.1} parent=47 // pred_fallthru
          _
        // Predicated region
        $region57: #{tpu_custom_call.1} parent=47 // pred_check
          %p626 = pneg %p610
        $region58: #{tpu_custom_call.1} parent=47 // pred_check_branch
          %628 = sbr.rel (%p626) target = $region60
        $region59: #{tpu_custom_call.1} parent=47 // pred_region
          %v629 = vld [vmem:[#allocation2] sm:$0xff]
          %v630 = vld [vmem:[#allocation2 + $0x8] sm:$0xff]
          %v631 = vld [vmem:[%s430] sm:$0x1]
          %v633 = vperm.slane %v631, 0
          %v635 = vadd.f32 %v629, %v633
          %v636 = vadd.f32 %v630, %v633
          %v637 = vld [vmem:[%s395] sm:$0xff]
          %v638 = vld [vmem:[%s395 + $0x8] sm:$0xff]
          %640 = vset.pattern.permute.xlu0 0
          %641 = vperm.xlu0 %640, %v637
          %v642 = vpop.permute.xlu0 %641
          %645 = vset.pattern.permute.xlu0 0
          %646 = vperm.xlu0 %645, %v638
          %v647 = vpop.permute.xlu0 %646
          %v649 = vmul.f32 %v635, %v642
          %v650 = vmul.f32 %v636, %v647
          %651 = vst.msk [vmem:[%s436] sm:$0xff] %vm453, %v649
          %652 = vst.msk [vmem:[%s436 + $0x8] sm:$0xff] %vm453, %v650
        $region60: #{tpu_custom_call.1} parent=47 // pred_fallthru
          _
      $region48: #{tpu_custom_call.1} parent=43 // pred_fallthru
        _
      %p653 = scmp.le.s32.totalorder %s438, 0
      // Predicated region
      $region61: #{tpu_custom_call.1} parent=43 // pred_check
        %p654 = pneg %p653
      $region62: #{tpu_custom_call.1} parent=43 // pred_check_branch
        %656 = sbr.rel (%p654) target = $region64
      $region63: #{tpu_custom_call.1} parent=43 // pred_region
        %p657 = scmp.eq.s32.totalorder %s37, 0
        // Predicated region
        $region65: #{tpu_custom_call.1} parent=63 // pred_check
          %p658 = pneg %p657
        $region66: #{tpu_custom_call.1} parent=63 // pred_check_branch
          %660 = sbr.rel (%p658) target = $region68
        $region67: #{tpu_custom_call.1} parent=63 // pred_region
          %vm661 = vcmask 261120
          %662 = vst.msk [vmem:[%s436] sm:$0xff] %vm661, 0.0
          %663 = vst.msk [vmem:[%s436 + $0x8] sm:$0xff] %vm661, 0.0
        $region68: #{tpu_custom_call.1} parent=63 // pred_fallthru
          _
      $region64: #{tpu_custom_call.1} parent=43 // pred_fallthru
        _
      %s664 = smul.u32 2, %s36
      %p665 = scmp.lt.s32.totalorder %s664, 21
      %s666 = scalar_select %p665, %s664, 21
      %s667 = smul.addr %s666, 8
      %s668 = scalar_lea.vmem %s8, %s667
      // Predicated region
      $region69: #{tpu_custom_call.1} parent=43 // pred_check
        %p669 = pneg %p232
      $region70: #{tpu_custom_call.1} parent=43 // pred_check_branch
        %671 = sbr.rel (%p669) target = $region72
      $region71: #{tpu_custom_call.1} parent=43 // pred_region
        %s672 = smul.u32 2, %s36
      $region72: #{tpu_custom_call.1} parent=43 // pred_fallthru
        _
    $region44: #{tpu_custom_call.1} parent=5 // pred_fallthru
      _
    %p673 = scmp.le.s32.totalorder 2, %s27
    // Predicated region
    $region73: #{tpu_custom_call.1} parent=5 // pred_check
      %p674 = pneg %p673
    $region74: #{tpu_custom_call.1} parent=5 // pred_check_branch
      %676 = sbr.rel (%p674) target = $region76
    $region75: #{tpu_custom_call.1} parent=5 // pred_region
      %s677 = ssub.s32 %s27, 2
      // Predicated region
      $region77: #{tpu_custom_call.1} parent=75 // pred_check
        %p678 = pneg %p238
      $region78: #{tpu_custom_call.1} parent=75 // pred_check_branch
        %680 = sbr.rel (%p678) target = $region80
      $region79: #{tpu_custom_call.1} parent=75 // pred_region
        %s681 = smul.u32 2, %s38
        %p682 = scmp.lt.s32.totalorder %s681, 21
        %s683 = scalar_select %p682, %s681, 21
        %s684 = smul.addr %s683, 8
        %s685 = scalar_lea.vmem %s8, %s684
      $region80: #{tpu_custom_call.1} parent=75 // pred_fallthru
        _
    $region76: #{tpu_custom_call.1} parent=5 // pred_fallthru
      _
  $region6: #{tpu_custom_call.1} parent=0 // loop_footer
    %s31 = sadd.s32 1, %s27
  $region7: #{tpu_custom_call.1} parent=0 // loop_footer_branch
    %26 = sbr.rel target = $region3
  $region8: #{tpu_custom_call.1} parent=0 // loop_exit
    _

</llo_original>
